<compile_context>
chip_gen: v7x
topology: tpu7x:2x2x1
jax: 0.10.0
libtpu: 0.0.40
codegen_flags: <defaults>
</compile_context>

<pallas_src>
import jax
import jax.numpy as jnp
from jax.experimental import pallas as pl
from jax.experimental.pallas import tpu as pltpu

IN_FEATURES = 13
HIDDEN = 64
OUT_FEATURES = 1  # module default (out_features=1, return_raw=False -> forward returns x)


def _mlp_kernel(x_ref, w1_ref, b1_ref, w2_ref, b2_ref, w3_ref, b3_ref,
                w4_ref, b4_ref, o_ref):
    cdt = w1_ref.dtype                      # compute dtype for MXU operands (bf16 or f32)
    x = x_ref[...]                          # (13, tile), feature-major, lane-dense

    # Layer 1: (64,13) @ (13,tile) -> (64,tile), accumulate in f32, add f32 bias, ReLU.
    h = jnp.dot(w1_ref[...], x, preferred_element_type=jnp.float32) + b1_ref[...]
    h = jnp.maximum(h, 0.0).astype(cdt)

    # Layer 2: (64,64) @ (64,tile) -> (64,tile)
    h = jnp.dot(w2_ref[...], h, preferred_element_type=jnp.float32) + b2_ref[...]
    h = jnp.maximum(h, 0.0).astype(cdt)

    # Layer 3: (64,64) @ (64,tile) -> (64,tile)
    h = jnp.dot(w3_ref[...], h, preferred_element_type=jnp.float32) + b3_ref[...]
    h = jnp.maximum(h, 0.0).astype(cdt)

    # Layer 4: (1,64) @ (64,tile) -> (1,tile), lane-dense output row (full-width vst).
    out = jnp.dot(w4_ref[...], h, preferred_element_type=jnp.float32) + b4_ref[...]
    o_ref[...] = out.astype(o_ref.dtype)


def _round_up(a, b):
    return int(pl.cdiv(a, b)) * b


def net_forward(x, params, *, batch_tile=4096, compute_dtype=jnp.bfloat16):
    """Forward pass of Net as a single Pallas kernel.

    x: (N, in_features) array (any float dtype; normalized to f32 then compute_dtype).
    params: dict with torch-layout weights w1..w4 of shapes (64,13),(64,64),(64,64),(1,64)
            and biases b1..b3 of shape (64,1), b4 of shape (1,1), all float32.
    Returns: (N, out_features) float32.
    """
    n, f = x.shape
    assert f == IN_FEATURES
    assert batch_tile % 128 == 0, "batch_tile must be a multiple of 128"
    x = x.astype(jnp.float32)  # dtype guard: keep semantics fixed for any caller dtype

    # Tile selection: amortize per-step pipeline overhead with large tiles, clamp to the
    # (128-rounded) batch so tiny batches stay one step, and guarantee >=2 grid steps
    # whenever the batch allows it so the parallel axis can shard across v7x's 2 TCs.
    n128 = _round_up(max(n, 1), 128)
    tile = min(batch_tile, n128)
    if n128 >= 256:
        tile = min(tile, _round_up(n128 // 2, 128))
    n_pad = _round_up(n, tile)
    if n_pad != n:
        x = jnp.pad(x, ((0, n_pad - n), (0, 0)))

    # Feature-major, lane-dense kernel input; single cheap XLA transpose in the wrapper.
    x_t = x.T.astype(compute_dtype)                       # (13, n_pad)

    w1 = params["w1"].astype(compute_dtype)
    w2 = params["w2"].astype(compute_dtype)
    w3 = params["w3"].astype(compute_dtype)
    w4 = params["w4"].astype(compute_dtype)
    b1 = params["b1"].astype(jnp.float32)
    b2 = params["b2"].astype(jnp.float32)
    b3 = params["b3"].astype(jnp.float32)
    b4 = params["b4"].astype(jnp.float32)

    grid = (n_pad // tile,)

    def full(arr):
        # Full-array block with a constant index map: fetched once, never re-DMAed
        # (Pallas skips the copy when the block index is unchanged between steps).
        nd = arr.ndim
        return pl.BlockSpec(arr.shape, lambda i, _nd=nd: (0,) * _nd)

    out_row = pl.pallas_call(
        _mlp_kernel,
        out_shape=jax.ShapeDtypeStruct((1, n_pad), jnp.float32),
        grid_spec=pltpu.PrefetchScalarGridSpec(
            num_scalar_prefetch=0,
            grid=grid,
            in_specs=[
                pl.BlockSpec((IN_FEATURES, tile), lambda i: (0, i)),
                full(w1), full(b1),
                full(w2), full(b2),
                full(w3), full(b3),
                full(w4), full(b4),
            ],
            out_specs=pl.BlockSpec((1, tile), lambda i: (0, i)),
        ),
        compiler_params=pltpu.CompilerParams(
            dimension_semantics=("parallel",)),
    )(x_t, w1, b1, w2, b2, w3, b3, w4, b4)

    # (1, n_pad) row -> (n, 1) column (pure reshape + slice).  Padded rows carry
    # bias/ReLU garbage and are dropped here; only the sliced result is returned.
    return out_row.reshape(n_pad, OUT_FEATURES)[:n]


def init_params(key):
    """Deterministic init mimicking PyTorch nn.Linear default U[-1/sqrt(fan_in), 1/sqrt(fan_in)].

    All weights stored in torch layout (out_features, in_features); biases as column
    vectors (out_features, 1) so they broadcast along the lane (batch-tile) dimension.
    """
    params = {}
    dims = [(IN_FEATURES, HIDDEN), (HIDDEN, HIDDEN), (HIDDEN, HIDDEN), (HIDDEN, OUT_FEATURES)]
    for idx, (fan_in, fan_out) in enumerate(dims, start=1):
        key, kw, kb = jax.random.split(key, 3)
        bound = 1.0 / jnp.sqrt(float(fan_in))
        params[f"w{idx}"] = jax.random.uniform(
            kw, (fan_out, fan_in), jnp.float32, -bound, bound)
        params[f"b{idx}"] = jax.random.uniform(
            kb, (fan_out, 1), jnp.float32, -bound, bound)
    return params


def net_forward_ref(x, params):
    """Pure-JAX f32 reference for validation."""
    x = x.astype(jnp.float32)
    h = jnp.maximum(x @ params["w1"].T + params["b1"].T, 0.0)
    h = jnp.maximum(h @ params["w2"].T + params["b2"].T, 0.0)
    h = jnp.maximum(h @ params["w3"].T + params["b3"].T, 0.0)
    return h @ params["w4"].T + params["b4"].T


if __name__ == "__main__":
    key = jax.random.PRNGKey(0)
    key_x, key_x2, key_p = jax.random.split(key, 3)
    params = init_params(key_p)

    # Small, non-multiple-of-128 batch (padding, single grid step), f32 compute path
    # for a tight-tolerance correctness check.
    batch = 10
    x = jax.random.normal(key_x, (batch, IN_FEATURES), jnp.float32)
    ref = net_forward_ref(x, params)

    out_f32 = jax.block_until_ready(
        net_forward(x, params, compute_dtype=jnp.float32))
    assert out_f32.shape == (batch, OUT_FEATURES)
    assert jnp.allclose(out_f32, ref, atol=1e-5, rtol=1e-5), \
        "mismatch vs reference (f32 compute, small batch)"

    # Same batch on the default bf16-operand / f32-accumulate path (relaxed tolerance).
    out_bf16 = jax.block_until_ready(net_forward(x, params))
    assert jnp.allclose(out_bf16, ref, atol=3e-2, rtol=3e-2), \
        "mismatch vs reference (bf16 compute, small batch)"

    # Ragged batch that forces >=2 grid steps (tile clamp) on the default path.
    batch2 = 300
    x2 = jax.random.normal(key_x2, (batch2, IN_FEATURES), jnp.float32)
    ref2 = net_forward_ref(x2, params)
    out2 = jax.block_until_ready(net_forward(x2, params))
    assert out2.shape == (batch2, OUT_FEATURES)
    assert jnp.allclose(out2, ref2, atol=3e-2, rtol=3e-2), \
        "mismatch vs reference (bf16 compute, multi-tile)"

    # TODO(synk): out_features > 1 (tuple split) and explainer_mode (.numpy()) paths are
    # wrapper-level concerns not represented in the kernel (module default is out_features=1).
    print("KERNEL_OK")
</pallas_src>

<mosaic_0001>
module attributes {stable_mosaic.version = 11 : i64} {
  func.func @_mlp_kernel(%arg0: i32, %arg1: memref<13x128xf32, #tpu.memory_space<vmem>>, %arg2: memref<64x13xf32, #tpu.memory_space<vmem>>, %arg3: memref<64x1xf32, #tpu.memory_space<vmem>>, %arg4: memref<64x64xf32, #tpu.memory_space<vmem>>, %arg5: memref<64x1xf32, #tpu.memory_space<vmem>>, %arg6: memref<64x64xf32, #tpu.memory_space<vmem>>, %arg7: memref<64x1xf32, #tpu.memory_space<vmem>>, %arg8: memref<1x64xf32, #tpu.memory_space<vmem>>, %arg9: memref<1x1xf32, #tpu.memory_space<vmem>>, %arg10: memref<1x128xf32, #tpu.memory_space<vmem>>) attributes {dimension_semantics = [#tpu.dimension_semantics<parallel>], iteration_bounds = array<i64: 1>, scalar_prefetch = 0 : i64, scratch_operands = 0 : i64, tpu.core_type = #tpu.core_type<tc>, window_params = [{transform_indices = @transform_0, window_bounds = array<i64: 13, 128>}, {pipeline_mode = #tpu.pipeline_mode<synchronous>, transform_indices = @transform_1, window_bounds = array<i64: 64, 13>}, {pipeline_mode = #tpu.pipeline_mode<synchronous>, transform_indices = @transform_2, window_bounds = array<i64: 64, 1>}, {pipeline_mode = #tpu.pipeline_mode<synchronous>, transform_indices = @transform_3, window_bounds = array<i64: 64, 64>}, {pipeline_mode = #tpu.pipeline_mode<synchronous>, transform_indices = @transform_4, window_bounds = array<i64: 64, 1>}, {pipeline_mode = #tpu.pipeline_mode<synchronous>, transform_indices = @transform_5, window_bounds = array<i64: 64, 64>}, {pipeline_mode = #tpu.pipeline_mode<synchronous>, transform_indices = @transform_6, window_bounds = array<i64: 64, 1>}, {pipeline_mode = #tpu.pipeline_mode<synchronous>, transform_indices = @transform_7, window_bounds = array<i64: 1, 64>}, {pipeline_mode = #tpu.pipeline_mode<synchronous>, transform_indices = @transform_8, window_bounds = array<i64: 1, 1>}, {transform_indices = @transform_9, window_bounds = array<i64: 1, 128>}]} {
    %c0 = arith.constant 0 : index
    %c0_0 = arith.constant 0 : index
    %0 = vector.load %arg1[%c0, %c0_0] : memref<13x128xf32, #tpu.memory_space<vmem>>, vector<13x128xf32>
    %c0_1 = arith.constant 0 : index
    %c0_2 = arith.constant 0 : index
    %1 = vector.load %arg2[%c0_1, %c0_2] : memref<64x13xf32, #tpu.memory_space<vmem>>, vector<64x13xf32>
    %cst = arith.constant dense<0.000000e+00> : vector<64x128xf32>
    %2 = tpu.matmul %1, %0, %cst {dimension_numbers = #tpu.dot_dimension_numbers<[1], [0], [0], [1], [0, 0, 1, 1], [], []>} : vector<64x13xf32>, vector<13x128xf32>, vector<64x128xf32> -> vector<64x128xf32>
    %c0_3 = arith.constant 0 : index
    %c0_4 = arith.constant 0 : index
    %3 = vector.load %arg3[%c0_3, %c0_4] : memref<64x1xf32, #tpu.memory_space<vmem>>, vector<64x1xf32>
    %4 = vector.broadcast %3 : vector<64x1xf32> to vector<64x128xf32>
    %5 = arith.addf %2, %4 : vector<64x128xf32>
    %cst_5 = arith.constant 0.000000e+00 : f32
    %6 = vector.broadcast %cst_5 : f32 to vector<64x128xf32>
    %7 = arith.maximumf %5, %6 : vector<64x128xf32>
    %c0_6 = arith.constant 0 : index
    %c0_7 = arith.constant 0 : index
    %8 = vector.load %arg4[%c0_6, %c0_7] : memref<64x64xf32, #tpu.memory_space<vmem>>, vector<64x64xf32>
    %cst_8 = arith.constant dense<0.000000e+00> : vector<64x128xf32>
    %9 = tpu.matmul %8, %7, %cst_8 {dimension_numbers = #tpu.dot_dimension_numbers<[1], [0], [0], [1], [0, 0, 1, 1], [], []>} : vector<64x64xf32>, vector<64x128xf32>, vector<64x128xf32> -> vector<64x128xf32>
    %c0_9 = arith.constant 0 : index
    %c0_10 = arith.constant 0 : index
    %10 = vector.load %arg5[%c0_9, %c0_10] : memref<64x1xf32, #tpu.memory_space<vmem>>, vector<64x1xf32>
    %11 = vector.broadcast %10 : vector<64x1xf32> to vector<64x128xf32>
    %12 = arith.addf %9, %11 : vector<64x128xf32>
    %cst_11 = arith.constant 0.000000e+00 : f32
    %13 = vector.broadcast %cst_11 : f32 to vector<64x128xf32>
    %14 = arith.maximumf %12, %13 : vector<64x128xf32>
    %c0_12 = arith.constant 0 : index
    %c0_13 = arith.constant 0 : index
    %15 = vector.load %arg6[%c0_12, %c0_13] : memref<64x64xf32, #tpu.memory_space<vmem>>, vector<64x64xf32>
    %cst_14 = arith.constant dense<0.000000e+00> : vector<64x128xf32>
    %16 = tpu.matmul %15, %14, %cst_14 {dimension_numbers = #tpu.dot_dimension_numbers<[1], [0], [0], [1], [0, 0, 1, 1], [], []>} : vector<64x64xf32>, vector<64x128xf32>, vector<64x128xf32> -> vector<64x128xf32>
    %c0_15 = arith.constant 0 : index
    %c0_16 = arith.constant 0 : index
    %17 = vector.load %arg7[%c0_15, %c0_16] : memref<64x1xf32, #tpu.memory_space<vmem>>, vector<64x1xf32>
    %18 = vector.broadcast %17 : vector<64x1xf32> to vector<64x128xf32>
    %19 = arith.addf %16, %18 : vector<64x128xf32>
    %cst_17 = arith.constant 0.000000e+00 : f32
    %20 = vector.broadcast %cst_17 : f32 to vector<64x128xf32>
    %21 = arith.maximumf %19, %20 : vector<64x128xf32>
    %c0_18 = arith.constant 0 : index
    %c0_19 = arith.constant 0 : index
    %22 = vector.load %arg8[%c0_18, %c0_19] : memref<1x64xf32, #tpu.memory_space<vmem>>, vector<1x64xf32>
    %cst_20 = arith.constant dense<0.000000e+00> : vector<1x128xf32>
    %23 = tpu.matmul %22, %21, %cst_20 {dimension_numbers = #tpu.dot_dimension_numbers<[1], [0], [0], [1], [0, 0, 1, 1], [], []>} : vector<1x64xf32>, vector<64x128xf32>, vector<1x128xf32> -> vector<1x128xf32>
    %c0_21 = arith.constant 0 : index
    %c0_22 = arith.constant 0 : index
    %24 = vector.load %arg9[%c0_21, %c0_22] : memref<1x1xf32, #tpu.memory_space<vmem>>, vector<1x1xf32>
    %25 = vector.broadcast %24 : vector<1x1xf32> to vector<1x128xf32>
    %26 = arith.addf %23, %25 : vector<1x128xf32>
    %c0_23 = arith.constant 0 : index
    %c0_24 = arith.constant 0 : index
    %27 = vector.load %arg10[%c0_23, %c0_24] : memref<1x128xf32, #tpu.memory_space<vmem>>, vector<1x128xf32>
    tpu.vector_store %arg10[%c0_23, %c0_24], %26 {strides = array<i32>} : memref<1x128xf32, #tpu.memory_space<vmem>>, vector<1x128xf32>,
    return
  }
  func.func @transform_0(%arg0: i32) -> (i32, i32) {
    %c0_i32 = arith.constant 0 : i32
    %c0_i32_0 = arith.constant 0 : i32
    return %c0_i32, %arg0 : i32, i32
  }
  func.func @transform_1(%arg0: i32) -> (i32, i32) {
    %c0_i32 = arith.constant 0 : i32
    %c0_i32_0 = arith.constant 0 : i32
    %c0_i32_1 = arith.constant 0 : i32
    return %c0_i32, %c0_i32_0 : i32, i32
  }
  func.func @transform_2(%arg0: i32) -> (i32, i32) {
    %c0_i32 = arith.constant 0 : i32
    %c0_i32_0 = arith.constant 0 : i32
    %c0_i32_1 = arith.constant 0 : i32
    return %c0_i32, %c0_i32_0 : i32, i32
  }
  func.func @transform_3(%arg0: i32) -> (i32, i32) {
    %c0_i32 = arith.constant 0 : i32
    %c0_i32_0 = arith.constant 0 : i32
    %c0_i32_1 = arith.constant 0 : i32
    return %c0_i32, %c0_i32_0 : i32, i32
  }
  func.func @transform_4(%arg0: i32) -> (i32, i32) {
    %c0_i32 = arith.constant 0 : i32
    %c0_i32_0 = arith.constant 0 : i32
    %c0_i32_1 = arith.constant 0 : i32
    return %c0_i32, %c0_i32_0 : i32, i32
  }
  func.func @transform_5(%arg0: i32) -> (i32, i32) {
    %c0_i32 = arith.constant 0 : i32
    %c0_i32_0 = arith.constant 0 : i32
    %c0_i32_1 = arith.constant 0 : i32
    return %c0_i32, %c0_i32_0 : i32, i32
  }
  func.func @transform_6(%arg0: i32) -> (i32, i32) {
    %c0_i32 = arith.constant 0 : i32
    %c0_i32_0 = arith.constant 0 : i32
    %c0_i32_1 = arith.constant 0 : i32
    return %c0_i32, %c0_i32_0 : i32, i32
  }
  func.func @transform_7(%arg0: i32) -> (i32, i32) {
    %c0_i32 = arith.constant 0 : i32
    %c0_i32_0 = arith.constant 0 : i32
    %c0_i32_1 = arith.constant 0 : i32
    return %c0_i32, %c0_i32_0 : i32, i32
  }
  func.func @transform_8(%arg0: i32) -> (i32, i32) {
    %c0_i32 = arith.constant 0 : i32
    %c0_i32_0 = arith.constant 0 : i32
    %c0_i32_1 = arith.constant 0 : i32
    return %c0_i32, %c0_i32_0 : i32, i32
  }
  func.func @transform_9(%arg0: i32) -> (i32, i32) {
    %c0_i32 = arith.constant 0 : i32
    %c0_i32_0 = arith.constant 0 : i32
    return %c0_i32, %arg0 : i32, i32
  }
}

</mosaic_0001>

<llo_original>
// kernel: tpu_custom_call.1
$region0: #{tpu_custom_call.1}
  #allocation0 [shape = 'u32[]', space=smem, size = 0x4, offset = 0x4, fixed_abs, tag = 'smem constant byte address 0x4 - core index']
  #allocation1 [shape = 'u32[144,128]{1,0:T(1,128)}', space=vmem, size = 0x12000, scoped, tag = 'internal scratch']
  #allocation2 [shape = 'f32[1,1]{1,0:T(1,128)S(1)}', space=vmem, size = 0x200, scoped, tag = 'scoped memory for tpu_custom_call.1']
  %s0 = inlined_call_operand.vmem [shape: f32[13,128], index: 0, kind: input, shape index: {}]
  %s1 = inlined_call_operand.vmem [shape: f32[64,13], index: 1, kind: input, shape index: {}]
  %s2 = inlined_call_operand.vmem [shape: f32[64,1], index: 2, kind: input, shape index: {}]
  %s3 = inlined_call_operand.vmem [shape: f32[64,64], index: 3, kind: input, shape index: {}]
  %s4 = inlined_call_operand.vmem [shape: f32[64,1], index: 4, kind: input, shape index: {}]
  %s5 = inlined_call_operand.vmem [shape: f32[64,64], index: 5, kind: input, shape index: {}]
  %s6 = inlined_call_operand.vmem [shape: f32[64,1], index: 6, kind: input, shape index: {}]
  %s7 = inlined_call_operand.vmem [shape: f32[1,64], index: 7, kind: input, shape index: {}]
  %s8 = inlined_call_operand.<no memory space> [shape: f32[1,1], index: 8, kind: input, shape index: {}]
  %s9 = inlined_call_operand.hbm [shape: f32[1,128], index: 9, kind: output, shape index: {}]
  %s10 = sld [smem:[#allocation0]]
  $region46: #{tpu_custom_call.1} parent=0
    _
  %s12 = ssub.s32 1, %s10
  %s13 = scalar_select 0, %s12, %s10
  %v14 = vstv %s8
  %15 = vst [vmem:[#allocation2] sm:$0x1] %v14
  $region1: #{tpu_custom_call.1} parent=0
    #allocation3 [shape = 'u8[512]{0}', space=vmem, size = 0x400, scoped, tag = 'output window, operand 0, single buffered']
    #allocation4 [shape = 's32[1]{0}', space=sflag, size = 0x4, scoped, tag = 'scoped memory for tpu_custom_call.1']
    %16 = vsyncpa [#allocation4], 0
    // Predicated region
    $region2: #{tpu_custom_call.1} parent=1 // pred_check
      _
    $region3: #{tpu_custom_call.1} parent=1 // pred_check_branch
      %18 = sbr.rel (0) target = $region5
    $region4: #{tpu_custom_call.1} parent=1 // pred_region
      _
    $region5: #{tpu_custom_call.1} parent=1 // pred_fallthru
      _
    // Predicated region
    $region6: #{tpu_custom_call.1} parent=1 // pred_check
      _
    $region7: #{tpu_custom_call.1} parent=1 // pred_check_branch
      %20 = sbr.rel (0) target = $region9
    $region8: #{tpu_custom_call.1} parent=1 // pred_region
      _
    $region9: #{tpu_custom_call.1} parent=1 // pred_fallthru
      _
    // Predicated region
    $region10: #{tpu_custom_call.1} parent=1 // pred_check
      _
    $region11: #{tpu_custom_call.1} parent=1 // pred_check_branch
      %22 = sbr.rel (0) target = $region13
    $region12: #{tpu_custom_call.1} parent=1 // pred_region
      _
    $region13: #{tpu_custom_call.1} parent=1 // pred_fallthru
      _
    // Predicated region
    $region14: #{tpu_custom_call.1} parent=1 // pred_check
      _
    $region15: #{tpu_custom_call.1} parent=1 // pred_check_branch
      %24 = sbr.rel (0) target = $region17
    $region16: #{tpu_custom_call.1} parent=1 // pred_region
      _
    $region17: #{tpu_custom_call.1} parent=1 // pred_fallthru
      _
    // Predicated region
    $region18: #{tpu_custom_call.1} parent=1 // pred_check
      _
    $region19: #{tpu_custom_call.1} parent=1 // pred_check_branch
      %26 = sbr.rel (0) target = $region21
    $region20: #{tpu_custom_call.1} parent=1 // pred_region
      _
    $region21: #{tpu_custom_call.1} parent=1 // pred_fallthru
      _
    // Predicated region
    $region22: #{tpu_custom_call.1} parent=1 // pred_check
      _
    $region23: #{tpu_custom_call.1} parent=1 // pred_check_branch
      %28 = sbr.rel (0) target = $region25
    $region24: #{tpu_custom_call.1} parent=1 // pred_region
      _
    $region25: #{tpu_custom_call.1} parent=1 // pred_fallthru
      _
    // Predicated region
    $region26: #{tpu_custom_call.1} parent=1 // pred_check
      _
    $region27: #{tpu_custom_call.1} parent=1 // pred_check_branch
      %30 = sbr.rel (0) target = $region29
    $region28: #{tpu_custom_call.1} parent=1 // pred_region
      _
    $region29: #{tpu_custom_call.1} parent=1 // pred_fallthru
      _
    // Predicated region
    $region30: #{tpu_custom_call.1} parent=1 // pred_check
      _
    $region31: #{tpu_custom_call.1} parent=1 // pred_check_branch
      %32 = sbr.rel (0) target = $region33
    $region32: #{tpu_custom_call.1} parent=1 // pred_region
      _
    $region33: #{tpu_custom_call.1} parent=1 // pred_fallthru
      _
    // Predicated region
    $region34: #{tpu_custom_call.1} parent=1 // pred_check
      _
    $region35: #{tpu_custom_call.1} parent=1 // pred_check_branch
      %34 = sbr.rel (0) target = $region37
    $region36: #{tpu_custom_call.1} parent=1 // pred_region
      _
    $region37: #{tpu_custom_call.1} parent=1 // pred_fallthru
      _
    %v35 = vld [vmem:[%s0] sm:$0xff]
    %v36 = vld [vmem:[%s0 + $0x8] sm:$0x1f]
    %v37 = vld [vmem:[%s1] sm:$0xff]
    %v38 = vld [vmem:[%s1 + $0x8] sm:$0xff]
    %v39 = vld [vmem:[%s1 + $0x10] sm:$0xff]
    %v40 = vld [vmem:[%s1 + $0x18] sm:$0xff]
    %v41 = vld [vmem:[%s1 + $0x20] sm:$0xff]
    %v42 = vld [vmem:[%s1 + $0x28] sm:$0xff]
    %v43 = vld [vmem:[%s1 + $0x30] sm:$0xff]
    %v44 = vld [vmem:[%s1 + $0x38] sm:$0xff]
    %v45 = vld [vmem:[%s2] sm:$0xff]
    %v46 = vld [vmem:[%s2 + $0x8] sm:$0xff]
    %v47 = vld [vmem:[%s2 + $0x10] sm:$0xff]
    %v48 = vld [vmem:[%s2 + $0x18] sm:$0xff]
    %v49 = vld [vmem:[%s2 + $0x20] sm:$0xff]
    %v50 = vld [vmem:[%s2 + $0x28] sm:$0xff]
    %v51 = vld [vmem:[%s2 + $0x30] sm:$0xff]
    %v52 = vld [vmem:[%s2 + $0x38] sm:$0xff]
    %54 = vset.pattern.permute.xlu0 0
    %55 = vperm.xlu0 %54, %v45
    %v56 = vpop.permute.xlu0 %55
    %59 = vset.pattern.permute.xlu0 0
    %60 = vperm.xlu0 %59, %v46
    %v61 = vpop.permute.xlu0 %60
    %64 = vset.pattern.permute.xlu0 0
    %65 = vperm.xlu0 %64, %v47
    %v66 = vpop.permute.xlu0 %65
    %69 = vset.pattern.permute.xlu0 0
    %70 = vperm.xlu0 %69, %v48
    %v71 = vpop.permute.xlu0 %70
    %74 = vset.pattern.permute.xlu0 0
    %75 = vperm.xlu0 %74, %v49
    %v76 = vpop.permute.xlu0 %75
    %79 = vset.pattern.permute.xlu0 0
    %80 = vperm.xlu0 %79, %v50
    %v81 = vpop.permute.xlu0 %80
    %84 = vset.pattern.permute.xlu0 0
    %85 = vperm.xlu0 %84, %v51
    %v86 = vpop.permute.xlu0 %85
    %89 = vset.pattern.permute.xlu0 0
    %90 = vperm.xlu0 %89, %v52
    %v91 = vpop.permute.xlu0 %90
    %vm93 = vcmask 105472
    %v95 = vsel %vm93, %v37, 0
    %v98 = vsel %vm93, %v38, 0
    %v101 = vsel %vm93, %v39, 0
    %v104 = vsel %vm93, %v40, 0
    %v107 = vsel %vm93, %v41, 0
    %v110 = vsel %vm93, %v42, 0
    %v113 = vsel %vm93, %v43, 0
    %v116 = vsel %vm93, %v44, 0
    %vm118 = vcmask 1044480
    %v120 = vsel %vm118, %v36, 0
    %122 = vmatprep.subr.mxu0 0.0
    %123 = vmatpush1.msra.mxu0 %v35
    %124 = vmatprep.subr.mxu0 0.0
    %125 = vmatpush1.msra.mxu0 %v120
    %126 = vmatprep.subr.mxu0 0.0
    %127 = vmatpush1.msra.mxu0 0.0
    %128 = vmatprep.subr.mxu0 0.0
    %129 = vmatpush1.msra.mxu0 0.0
    %130 = vmatprep.subr.mxu0 0.0
    %131 = vmatpush1.msra.mxu0 0.0
    %132 = vmatprep.subr.mxu0 0.0
    %133 = vmatpush1.msra.mxu0 0.0
    %134 = vmatprep.subr.mxu0 0.0
    %135 = vmatpush1.msra.mxu0 0.0
    %136 = vmatprep.subr.mxu0 0.0
    %137 = vmatpush1.msra.mxu0 0.0
    %138 = vmatprep.subr.mxu0 0.0
    %139 = vmatpush1.msra.mxu0 0.0
    %140 = vmatprep.subr.mxu0 0.0
    %141 = vmatpush1.msra.mxu0 0.0
    %142 = vmatprep.subr.mxu0 0.0
    %143 = vmatpush1.msra.mxu0 0.0
    %144 = vmatprep.subr.mxu0 0.0
    %145 = vmatpush1.msra.mxu0 0.0
    %146 = vmatprep.subr.mxu0 0.0
    %147 = vmatpush1.msra.mxu0 0.0
    %148 = vmatprep.subr.mxu0 0.0
    %149 = vmatpush1.msra.mxu0 0.0
    %150 = vmatprep.subr.mxu0 0.0
    %151 = vmatpush1.msra.mxu0 0.0
    %152 = vmatprep.subr.mxu0 0.0
    %153 = vmatpush1.msra.mxu0 0.0
    %154 = vmatprep.subr.mxu0 0.0
    %155 = vmatpush1.msra.mxu0 0.0
    %156 = vmatprep.subr.mxu0 0.0
    %157 = vmatpush1.msra.mxu0 0.0
    %158 = vmatprep.subr.mxu0 0.0
    %159 = vmatpush1.msra.mxu0 0.0
    %160 = vmatprep.subr.mxu0 0.0
    %161 = vmatpush1.msra.mxu0 0.0
    %162 = vmatprep.subr.mxu0 0.0
    %163 = vmatpush1.msra.mxu0 0.0
    %164 = vmatprep.subr.mxu0 0.0
    %165 = vmatpush1.msra.mxu0 0.0
    %166 = vmatprep.subr.mxu0 0.0
    %167 = vmatpush1.msra.mxu0 0.0
    %168 = vmatprep.subr.mxu0 0.0
    %169 = vmatpush1.msra.mxu0 0.0
    %170 = vmatprep.subr.mxu0 0.0
    %171 = vmatpush1.msra.mxu0 0.0
    %172 = vmatprep.subr.mxu0 0.0
    %173 = vmatpush1.msra.mxu0 0.0
    %174 = vmatprep.subr.mxu0 0.0
    %175 = vmatpush1.msra.mxu0 0.0
    %176 = vmatprep.subr.mxu0 0.0
    %177 = vmatpush1.msra.mxu0 0.0
    %178 = vmatprep.subr.mxu0 0.0
    %179 = vmatpush1.msra.mxu0 0.0
    %180 = vmatprep.subr.mxu0 0.0
    %181 = vmatpush1.msra.mxu0 0.0
    %182 = vmatprep.subr.mxu0 0.0
    %183 = vmatpush1.msra.mxu0 0.0
    %184 = vmatprep.subr.mxu0 0.0
    %185 = vmatpush1.msra.mxu0 0.0
    %186 = vmatprep.mubr.f32.mxu0 0.0
    %187 = vmatmul.mubr.f32.gmra.mrb[0].mxu0 %v95
    %v188 = vpop.f32.mrb[0].mxu0
    %v189 = vadd.f32 %v56, %v188
    %v190 = vpop.f32.mrb[0].mxu0
    %191 = vmatprep.mubr.f32.mxu0 0.0
    %192 = vmatmul.mubr.f32.gmra.mrb[0].mxu0 %v98
    %v193 = vpop.f32.mrb[0].mxu0
    %v194 = vadd.f32 %v61, %v193
    %v195 = vpop.f32.mrb[0].mxu0
    %196 = vmatprep.mubr.f32.mxu0 0.0
    %197 = vmatmul.mubr.f32.gmra.mrb[0].mxu0 %v101
    %v198 = vpop.f32.mrb[0].mxu0
    %v199 = vadd.f32 %v66, %v198
    %v200 = vpop.f32.mrb[0].mxu0
    %201 = vmatprep.mubr.f32.mxu0 0.0
    %202 = vmatmul.mubr.f32.gmra.mrb[0].mxu0 %v104
    %v203 = vpop.f32.mrb[0].mxu0
    %v204 = vadd.f32 %v71, %v203
    %v205 = vpop.f32.mrb[0].mxu0
    %206 = vmatprep.mubr.f32.mxu0 0.0
    %207 = vmatmul.mubr.f32.gmra.mrb[0].mxu0 %v107
    %v208 = vpop.f32.mrb[0].mxu0
    %v209 = vadd.f32 %v76, %v208
    %v210 = vpop.f32.mrb[0].mxu0
    %211 = vmatprep.mubr.f32.mxu0 0.0
    %212 = vmatmul.mubr.f32.gmra.mrb[0].mxu0 %v110
    %v213 = vpop.f32.mrb[0].mxu0
    %v214 = vadd.f32 %v81, %v213
    %v215 = vpop.f32.mrb[0].mxu0
    %216 = vmatprep.mubr.f32.mxu0 0.0
    %217 = vmatmul.mubr.f32.gmra.mrb[0].mxu0 %v113
    %v218 = vpop.f32.mrb[0].mxu0
    %v219 = vadd.f32 %v86, %v218
    %v220 = vpop.f32.mrb[0].mxu0
    %221 = vmatprep.mubr.f32.mxu0 0.0
    %222 = vmatmul.mubr.f32.gmra.mrb[0].mxu0 %v116
    %v223 = vpop.f32.mrb[0].mxu0
    %v224 = vadd.f32 %v91, %v223
    %v225 = vpop.f32.mrb[0].mxu0
    %226 = vdwg.mxu0
    %v227 = vmax.f32 %v189, 0.0
    %v228 = vmax.f32 %v194, 0.0
    %v229 = vmax.f32 %v199, 0.0
    %v230 = vmax.f32 %v204, 0.0
    %v231 = vmax.f32 %v209, 0.0
    %v232 = vmax.f32 %v214, 0.0
    %v233 = vmax.f32 %v219, 0.0
    %v234 = vmax.f32 %v224, 0.0
    %v235 = vld [vmem:[%s3] sm:$0xff]
    %v236 = vld [vmem:[%s3 + $0x8] sm:$0xff]
    %v237 = vld [vmem:[%s3 + $0x10] sm:$0xff]
    %v238 = vld [vmem:[%s3 + $0x18] sm:$0xff]
    %v239 = vld [vmem:[%s3 + $0x20] sm:$0xff]
    %v240 = vld [vmem:[%s3 + $0x28] sm:$0xff]
    %v241 = vld [vmem:[%s3 + $0x30] sm:$0xff]
    %v242 = vld [vmem:[%s3 + $0x38] sm:$0xff]
    %v243 = vld [vmem:[%s4] sm:$0xff]
    %v244 = vld [vmem:[%s4 + $0x8] sm:$0xff]
    %v245 = vld [vmem:[%s4 + $0x10] sm:$0xff]
    %v246 = vld [vmem:[%s4 + $0x18] sm:$0xff]
    %v247 = vld [vmem:[%s4 + $0x20] sm:$0xff]
    %v248 = vld [vmem:[%s4 + $0x28] sm:$0xff]
    %v249 = vld [vmem:[%s4 + $0x30] sm:$0xff]
    %v250 = vld [vmem:[%s4 + $0x38] sm:$0xff]
    %252 = vset.pattern.permute.xlu0 0
    %253 = vperm.xlu0 %252, %v243
    %v254 = vpop.permute.xlu0 %253
    %257 = vset.pattern.permute.xlu0 0
    %258 = vperm.xlu0 %257, %v244
    %v259 = vpop.permute.xlu0 %258
    %262 = vset.pattern.permute.xlu0 0
    %263 = vperm.xlu0 %262, %v245
    %v264 = vpop.permute.xlu0 %263
    %267 = vset.pattern.permute.xlu0 0
    %268 = vperm.xlu0 %267, %v246
    %v269 = vpop.permute.xlu0 %268
    %272 = vset.pattern.permute.xlu0 0
    %273 = vperm.xlu0 %272, %v247
    %v274 = vpop.permute.xlu0 %273
    %277 = vset.pattern.permute.xlu0 0
    %278 = vperm.xlu0 %277, %v248
    %v279 = vpop.permute.xlu0 %278
    %282 = vset.pattern.permute.xlu0 0
    %283 = vperm.xlu0 %282, %v249
    %v284 = vpop.permute.xlu0 %283
    %287 = vset.pattern.permute.xlu0 0
    %288 = vperm.xlu0 %287, %v250
    %v289 = vpop.permute.xlu0 %288
    %vm291 = vcmask 523264
    %v293 = vsel %vm291, %v235, 0
    %v296 = vsel %vm291, %v236, 0
    %v299 = vsel %vm291, %v237, 0
    %v302 = vsel %vm291, %v238, 0
    %v305 = vsel %vm291, %v239, 0
    %v308 = vsel %vm291, %v240, 0
    %v311 = vsel %vm291, %v241, 0
    %v314 = vsel %vm291, %v242, 0
    %316 = vmatprep.subr.mxu0 0.0
    %317 = vmatpush1.msra.mxu0 %v227
    %318 = vmatprep.subr.mxu0 0.0
    %319 = vmatpush1.msra.mxu0 %v228
    %320 = vmatprep.subr.mxu0 0.0
    %321 = vmatpush1.msra.mxu0 %v229
    %322 = vmatprep.subr.mxu0 0.0
    %323 = vmatpush1.msra.mxu0 %v230
    %324 = vmatprep.subr.mxu0 0.0
    %325 = vmatpush1.msra.mxu0 %v231
    %326 = vmatprep.subr.mxu0 0.0
    %327 = vmatpush1.msra.mxu0 %v232
    %328 = vmatprep.subr.mxu0 0.0
    %329 = vmatpush1.msra.mxu0 %v233
    %330 = vmatprep.subr.mxu0 0.0
    %331 = vmatpush1.msra.mxu0 %v234
    %332 = vmatprep.subr.mxu0 0.0
    %333 = vmatpush1.msra.mxu0 0.0
    %334 = vmatprep.subr.mxu0 0.0
    %335 = vmatpush1.msra.mxu0 0.0
    %336 = vmatprep.subr.mxu0 0.0
    %337 = vmatpush1.msra.mxu0 0.0
    %338 = vmatprep.subr.mxu0 0.0
    %339 = vmatpush1.msra.mxu0 0.0
    %340 = vmatprep.subr.mxu0 0.0
    %341 = vmatpush1.msra.mxu0 0.0
    %342 = vmatprep.subr.mxu0 0.0
    %343 = vmatpush1.msra.mxu0 0.0
    %344 = vmatprep.subr.mxu0 0.0
    %345 = vmatpush1.msra.mxu0 0.0
    %346 = vmatprep.subr.mxu0 0.0
    %347 = vmatpush1.msra.mxu0 0.0
    %348 = vmatprep.subr.mxu0 0.0
    %349 = vmatpush1.msra.mxu0 0.0
    %350 = vmatprep.subr.mxu0 0.0
    %351 = vmatpush1.msra.mxu0 0.0
    %352 = vmatprep.subr.mxu0 0.0
    %353 = vmatpush1.msra.mxu0 0.0
    %354 = vmatprep.subr.mxu0 0.0
    %355 = vmatpush1.msra.mxu0 0.0
    %356 = vmatprep.subr.mxu0 0.0
    %357 = vmatpush1.msra.mxu0 0.0
    %358 = vmatprep.subr.mxu0 0.0
    %359 = vmatpush1.msra.mxu0 0.0
    %360 = vmatprep.subr.mxu0 0.0
    %361 = vmatpush1.msra.mxu0 0.0
    %362 = vmatprep.subr.mxu0 0.0
    %363 = vmatpush1.msra.mxu0 0.0
    %364 = vmatprep.subr.mxu0 0.0
    %365 = vmatpush1.msra.mxu0 0.0
    %366 = vmatprep.subr.mxu0 0.0
    %367 = vmatpush1.msra.mxu0 0.0
    %368 = vmatprep.subr.mxu0 0.0
    %369 = vmatpush1.msra.mxu0 0.0
    %370 = vmatprep.subr.mxu0 0.0
    %371 = vmatpush1.msra.mxu0 0.0
    %372 = vmatprep.subr.mxu0 0.0
    %373 = vmatpush1.msra.mxu0 0.0
    %374 = vmatprep.subr.mxu0 0.0
    %375 = vmatpush1.msra.mxu0 0.0
    %376 = vmatprep.subr.mxu0 0.0
    %377 = vmatpush1.msra.mxu0 0.0
    %378 = vmatprep.subr.mxu0 0.0
    %379 = vmatpush1.msra.mxu0 0.0
    %380 = vmatprep.mubr.f32.mxu0 0.0
    %381 = vmatmul.mubr.f32.gmra.mrb[0].mxu0 %v293
    %v382 = vpop.f32.mrb[0].mxu0
    %v383 = vadd.f32 %v254, %v382
    %v384 = vpop.f32.mrb[0].mxu0
    %385 = vmatprep.mubr.f32.mxu0 0.0
    %386 = vmatmul.mubr.f32.gmra.mrb[0].mxu0 %v296
    %v387 = vpop.f32.mrb[0].mxu0
    %v388 = vadd.f32 %v259, %v387
    %v389 = vpop.f32.mrb[0].mxu0
    %390 = vmatprep.mubr.f32.mxu0 0.0
    %391 = vmatmul.mubr.f32.gmra.mrb[0].mxu0 %v299
    %v392 = vpop.f32.mrb[0].mxu0
    %v393 = vadd.f32 %v264, %v392
    %v394 = vpop.f32.mrb[0].mxu0
    %395 = vmatprep.mubr.f32.mxu0 0.0
    %396 = vmatmul.mubr.f32.gmra.mrb[0].mxu0 %v302
    %v397 = vpop.f32.mrb[0].mxu0
    %v398 = vadd.f32 %v269, %v397
    %v399 = vpop.f32.mrb[0].mxu0
    %400 = vmatprep.mubr.f32.mxu0 0.0
    %401 = vmatmul.mubr.f32.gmra.mrb[0].mxu0 %v305
    %v402 = vpop.f32.mrb[0].mxu0
    %v403 = vadd.f32 %v274, %v402
    %v404 = vpop.f32.mrb[0].mxu0
    %405 = vmatprep.mubr.f32.mxu0 0.0
    %406 = vmatmul.mubr.f32.gmra.mrb[0].mxu0 %v308
    %v407 = vpop.f32.mrb[0].mxu0
    %v408 = vadd.f32 %v279, %v407
    %v409 = vpop.f32.mrb[0].mxu0
    %410 = vmatprep.mubr.f32.mxu0 0.0
    %411 = vmatmul.mubr.f32.gmra.mrb[0].mxu0 %v311
    %v412 = vpop.f32.mrb[0].mxu0
    %v413 = vadd.f32 %v284, %v412
    %v414 = vpop.f32.mrb[0].mxu0
    %415 = vmatprep.mubr.f32.mxu0 0.0
    %416 = vmatmul.mubr.f32.gmra.mrb[0].mxu0 %v314
    %v417 = vpop.f32.mrb[0].mxu0
    %v418 = vadd.f32 %v289, %v417
    %v419 = vpop.f32.mrb[0].mxu0
    %420 = vdwg.mxu0
    %v421 = vmax.f32 %v383, 0.0
    %v422 = vmax.f32 %v388, 0.0
    %v423 = vmax.f32 %v393, 0.0
    %v424 = vmax.f32 %v398, 0.0
    %v425 = vmax.f32 %v403, 0.0
    %v426 = vmax.f32 %v408, 0.0
    %v427 = vmax.f32 %v413, 0.0
    %v428 = vmax.f32 %v418, 0.0
    %v429 = vld [vmem:[%s5] sm:$0xff]
    %v430 = vld [vmem:[%s5 + $0x8] sm:$0xff]
    %v431 = vld [vmem:[%s5 + $0x10] sm:$0xff]
    %v432 = vld [vmem:[%s5 + $0x18] sm:$0xff]
    %v433 = vld [vmem:[%s5 + $0x20] sm:$0xff]
    %v434 = vld [vmem:[%s5 + $0x28] sm:$0xff]
    %v435 = vld [vmem:[%s5 + $0x30] sm:$0xff]
    %v436 = vld [vmem:[%s5 + $0x38] sm:$0xff]
    %v437 = vld [vmem:[%s6] sm:$0xff]
    %v438 = vld [vmem:[%s6 + $0x8] sm:$0xff]
    %v439 = vld [vmem:[%s6 + $0x10] sm:$0xff]
    %v440 = vld [vmem:[%s6 + $0x18] sm:$0xff]
    %v441 = vld [vmem:[%s6 + $0x20] sm:$0xff]
    %v442 = vld [vmem:[%s6 + $0x28] sm:$0xff]
    %v443 = vld [vmem:[%s6 + $0x30] sm:$0xff]
    %v444 = vld [vmem:[%s6 + $0x38] sm:$0xff]
    %446 = vset.pattern.permute.xlu0 0
    %447 = vperm.xlu0 %446, %v437
    %v448 = vpop.permute.xlu0 %447
    %451 = vset.pattern.permute.xlu0 0
    %452 = vperm.xlu0 %451, %v438
    %v453 = vpop.permute.xlu0 %452
    %456 = vset.pattern.permute.xlu0 0
    %457 = vperm.xlu0 %456, %v439
    %v458 = vpop.permute.xlu0 %457
    %461 = vset.pattern.permute.xlu0 0
    %462 = vperm.xlu0 %461, %v440
    %v463 = vpop.permute.xlu0 %462
    %466 = vset.pattern.permute.xlu0 0
    %467 = vperm.xlu0 %466, %v441
    %v468 = vpop.permute.xlu0 %467
    %471 = vset.pattern.permute.xlu0 0
    %472 = vperm.xlu0 %471, %v442
    %v473 = vpop.permute.xlu0 %472
    %476 = vset.pattern.permute.xlu0 0
    %477 = vperm.xlu0 %476, %v443
    %v478 = vpop.permute.xlu0 %477
    %481 = vset.pattern.permute.xlu0 0
    %482 = vperm.xlu0 %481, %v444
    %v483 = vpop.permute.xlu0 %482
    %v486 = vsel %vm291, %v429, 0
    %v489 = vsel %vm291, %v430, 0
    %v492 = vsel %vm291, %v431, 0
    %v495 = vsel %vm291, %v432, 0
    %v498 = vsel %vm291, %v433, 0
    %v501 = vsel %vm291, %v434, 0
    %v504 = vsel %vm291, %v435, 0
    %v507 = vsel %vm291, %v436, 0
    %509 = vmatprep.subr.mxu0 0.0
    %510 = vmatpush1.msra.mxu0 %v421
    %511 = vmatprep.subr.mxu0 0.0
    %512 = vmatpush1.msra.mxu0 %v422
    %513 = vmatprep.subr.mxu0 0.0
    %514 = vmatpush1.msra.mxu0 %v423
    %515 = vmatprep.subr.mxu0 0.0
    %516 = vmatpush1.msra.mxu0 %v424
    %517 = vmatprep.subr.mxu0 0.0
    %518 = vmatpush1.msra.mxu0 %v425
    %519 = vmatprep.subr.mxu0 0.0
    %520 = vmatpush1.msra.mxu0 %v426
    %521 = vmatprep.subr.mxu0 0.0
    %522 = vmatpush1.msra.mxu0 %v427
    %523 = vmatprep.subr.mxu0 0.0
    %524 = vmatpush1.msra.mxu0 %v428
    %525 = vmatprep.subr.mxu0 0.0
    %526 = vmatpush1.msra.mxu0 0.0
    %527 = vmatprep.subr.mxu0 0.0
    %528 = vmatpush1.msra.mxu0 0.0
    %529 = vmatprep.subr.mxu0 0.0
    %530 = vmatpush1.msra.mxu0 0.0
    %531 = vmatprep.subr.mxu0 0.0
    %532 = vmatpush1.msra.mxu0 0.0
    %533 = vmatprep.subr.mxu0 0.0
    %534 = vmatpush1.msra.mxu0 0.0
    %535 = vmatprep.subr.mxu0 0.0
    %536 = vmatpush1.msra.mxu0 0.0
    %537 = vmatprep.subr.mxu0 0.0
    %538 = vmatpush1.msra.mxu0 0.0
    %539 = vmatprep.subr.mxu0 0.0
    %540 = vmatpush1.msra.mxu0 0.0
    %541 = vmatprep.subr.mxu0 0.0
    %542 = vmatpush1.msra.mxu0 0.0
    %543 = vmatprep.subr.mxu0 0.0
    %544 = vmatpush1.msra.mxu0 0.0
    %545 = vmatprep.subr.mxu0 0.0
    %546 = vmatpush1.msra.mxu0 0.0
    %547 = vmatprep.subr.mxu0 0.0
    %548 = vmatpush1.msra.mxu0 0.0
    %549 = vmatprep.subr.mxu0 0.0
    %550 = vmatpush1.msra.mxu0 0.0
    %551 = vmatprep.subr.mxu0 0.0
    %552 = vmatpush1.msra.mxu0 0.0
    %553 = vmatprep.subr.mxu0 0.0
    %554 = vmatpush1.msra.mxu0 0.0
    %555 = vmatprep.subr.mxu0 0.0
    %556 = vmatpush1.msra.mxu0 0.0
    %557 = vmatprep.subr.mxu0 0.0
    %558 = vmatpush1.msra.mxu0 0.0
    %559 = vmatprep.subr.mxu0 0.0
    %560 = vmatpush1.msra.mxu0 0.0
    %561 = vmatprep.subr.mxu0 0.0
    %562 = vmatpush1.msra.mxu0 0.0
    %563 = vmatprep.subr.mxu0 0.0
    %564 = vmatpush1.msra.mxu0 0.0
    %565 = vmatprep.subr.mxu0 0.0
    %566 = vmatpush1.msra.mxu0 0.0
    %567 = vmatprep.subr.mxu0 0.0
    %568 = vmatpush1.msra.mxu0 0.0
    %569 = vmatprep.subr.mxu0 0.0
    %570 = vmatpush1.msra.mxu0 0.0
    %571 = vmatprep.subr.mxu0 0.0
    %572 = vmatpush1.msra.mxu0 0.0
    %573 = vmatprep.mubr.f32.mxu0 0.0
    %574 = vmatmul.mubr.f32.gmra.mrb[0].mxu0 %v486
    %v575 = vpop.f32.mrb[0].mxu0
    %v576 = vadd.f32 %v448, %v575
    %v577 = vpop.f32.mrb[0].mxu0
    %578 = vmatprep.mubr.f32.mxu0 0.0
    %579 = vmatmul.mubr.f32.gmra.mrb[0].mxu0 %v489
    %v580 = vpop.f32.mrb[0].mxu0
    %v581 = vadd.f32 %v453, %v580
    %v582 = vpop.f32.mrb[0].mxu0
    %583 = vmatprep.mubr.f32.mxu0 0.0
    %584 = vmatmul.mubr.f32.gmra.mrb[0].mxu0 %v492
    %v585 = vpop.f32.mrb[0].mxu0
    %v586 = vadd.f32 %v458, %v585
    %v587 = vpop.f32.mrb[0].mxu0
    %588 = vmatprep.mubr.f32.mxu0 0.0
    %589 = vmatmul.mubr.f32.gmra.mrb[0].mxu0 %v495
    %v590 = vpop.f32.mrb[0].mxu0
    %v591 = vadd.f32 %v463, %v590
    %v592 = vpop.f32.mrb[0].mxu0
    %593 = vmatprep.mubr.f32.mxu0 0.0
    %594 = vmatmul.mubr.f32.gmra.mrb[0].mxu0 %v498
    %v595 = vpop.f32.mrb[0].mxu0
    %v596 = vadd.f32 %v468, %v595
    %v597 = vpop.f32.mrb[0].mxu0
    %598 = vmatprep.mubr.f32.mxu0 0.0
    %599 = vmatmul.mubr.f32.gmra.mrb[0].mxu0 %v501
    %v600 = vpop.f32.mrb[0].mxu0
    %v601 = vadd.f32 %v473, %v600
    %v602 = vpop.f32.mrb[0].mxu0
    %603 = vmatprep.mubr.f32.mxu0 0.0
    %604 = vmatmul.mubr.f32.gmra.mrb[0].mxu0 %v504
    %v605 = vpop.f32.mrb[0].mxu0
    %v606 = vadd.f32 %v478, %v605
    %v607 = vpop.f32.mrb[0].mxu0
    %608 = vmatprep.mubr.f32.mxu0 0.0
    %609 = vmatmul.mubr.f32.gmra.mrb[0].mxu0 %v507
    %v610 = vpop.f32.mrb[0].mxu0
    %v611 = vadd.f32 %v483, %v610
    %v612 = vpop.f32.mrb[0].mxu0
    %613 = vdwg.mxu0
    %v614 = vmax.f32 %v576, 0.0
    %v615 = vmax.f32 %v581, 0.0
    %v616 = vmax.f32 %v586, 0.0
    %v617 = vmax.f32 %v591, 0.0
    %v618 = vmax.f32 %v596, 0.0
    %v619 = vmax.f32 %v601, 0.0
    %v620 = vmax.f32 %v606, 0.0
    %v621 = vmax.f32 %v611, 0.0
    %v622 = vld [vmem:[%s7] sm:$0x1]
    %v623 = vld [vmem:[#allocation2] sm:$0x1]
    %625 = vset.pattern.permute.xlu0 0
    %626 = vperm.xlu0 %625, %v623
    %v627 = vpop.permute.xlu0 %626
    %v629 = vlaneseq
    %v630 = vshrl.u32 %v629, 7
    %v631 = vsub.s32 0, %v630
    %v632 = vrot.slane %v627, %v631
    %v634 = vsel %vm291, %v622, 0
    %636 = vmatprep.subr.mxu0 0.0
    %637 = vmatpush1.msra.mxu0 %v614
    %638 = vmatprep.subr.mxu0 0.0
    %639 = vmatpush1.msra.mxu0 %v615
    %640 = vmatprep.subr.mxu0 0.0
    %641 = vmatpush1.msra.mxu0 %v616
    %642 = vmatprep.subr.mxu0 0.0
    %643 = vmatpush1.msra.mxu0 %v617
    %644 = vmatprep.subr.mxu0 0.0
    %645 = vmatpush1.msra.mxu0 %v618
    %646 = vmatprep.subr.mxu0 0.0
    %647 = vmatpush1.msra.mxu0 %v619
    %648 = vmatprep.subr.mxu0 0.0
    %649 = vmatpush1.msra.mxu0 %v620
    %650 = vmatprep.subr.mxu0 0.0
    %651 = vmatpush1.msra.mxu0 %v621
    %652 = vmatprep.subr.mxu0 0.0
    %653 = vmatpush1.msra.mxu0 0.0
    %654 = vmatprep.subr.mxu0 0.0
    %655 = vmatpush1.msra.mxu0 0.0
    %656 = vmatprep.subr.mxu0 0.0
    %657 = vmatpush1.msra.mxu0 0.0
    %658 = vmatprep.subr.mxu0 0.0
    %659 = vmatpush1.msra.mxu0 0.0
    %660 = vmatprep.subr.mxu0 0.0
    %661 = vmatpush1.msra.mxu0 0.0
    %662 = vmatprep.subr.mxu0 0.0
    %663 = vmatpush1.msra.mxu0 0.0
    %664 = vmatprep.subr.mxu0 0.0
    %665 = vmatpush1.msra.mxu0 0.0
    %666 = vmatprep.subr.mxu0 0.0
    %667 = vmatpush1.msra.mxu0 0.0
    %668 = vmatprep.subr.mxu0 0.0
    %669 = vmatpush1.msra.mxu0 0.0
    %670 = vmatprep.subr.mxu0 0.0
    %671 = vmatpush1.msra.mxu0 0.0
    %672 = vmatprep.subr.mxu0 0.0
    %673 = vmatpush1.msra.mxu0 0.0
    %674 = vmatprep.subr.mxu0 0.0
    %675 = vmatpush1.msra.mxu0 0.0
    %676 = vmatprep.subr.mxu0 0.0
    %677 = vmatpush1.msra.mxu0 0.0
    %678 = vmatprep.subr.mxu0 0.0
    %679 = vmatpush1.msra.mxu0 0.0
    %680 = vmatprep.subr.mxu0 0.0
    %681 = vmatpush1.msra.mxu0 0.0
    %682 = vmatprep.subr.mxu0 0.0
    %683 = vmatpush1.msra.mxu0 0.0
    %684 = vmatprep.subr.mxu0 0.0
    %685 = vmatpush1.msra.mxu0 0.0
    %686 = vmatprep.subr.mxu0 0.0
    %687 = vmatpush1.msra.mxu0 0.0
    %688 = vmatprep.subr.mxu0 0.0
    %689 = vmatpush1.msra.mxu0 0.0
    %690 = vmatprep.subr.mxu0 0.0
    %691 = vmatpush1.msra.mxu0 0.0
    %692 = vmatprep.subr.mxu0 0.0
    %693 = vmatpush1.msra.mxu0 0.0
    %694 = vmatprep.subr.mxu0 0.0
    %695 = vmatpush1.msra.mxu0 0.0
    %696 = vmatprep.subr.mxu0 0.0
    %697 = vmatpush1.msra.mxu0 0.0
    %698 = vmatprep.subr.mxu0 0.0
    %699 = vmatpush1.msra.mxu0 0.0
    %700 = vmatprep.mubr.f32.mxu0 0.0
    %701 = vmatmul.mubr.f32.gmra.mrb[0].mxu0 %v634
    %v702 = vpop.f32.mrb[0].mxu0
    %v703 = vadd.f32 %v632, %v702
    %v704 = vpop.f32.mrb[0].mxu0
    %705 = vdwg.mxu0
    %706 = vst [vmem:[#allocation3] sm:$0x1] %v703
    // Predicated region
    $region38: #{tpu_custom_call.1} parent=1 // pred_check
      _
    $region39: #{tpu_custom_call.1} parent=1 // pred_check_branch
      %708 = sbr.rel (0) target = $region41
    $region40: #{tpu_custom_call.1} parent=1 // pred_region
      %s710 = ssub.s32 16, 16
      %711 = vsyncadd [#allocation4], %s710
      %s713 = sshll.u32 [#allocation3], 4
      %s714 = int_to_ptr.vmem [resolvable:$true] %s713
      %716 = dma.vmem_to_hbm [thread:$0]  %s714, 16, %s9, [#allocation4]
    $region41: #{tpu_custom_call.1} parent=1 // pred_fallthru
      _
    // Predicated region
    $region42: #{tpu_custom_call.1} parent=1 // pred_check
      _
    $region43: #{tpu_custom_call.1} parent=1 // pred_check_branch
      %718 = sbr.rel (0) target = $region45
    $region44: #{tpu_custom_call.1} parent=1 // pred_region
      %719 = dma.done [#allocation4], 16
    $region45: #{tpu_custom_call.1} parent=1 // pred_fallthru
      _
    %720 = vsyncpa [#allocation4], 1

</llo_original>
